<compile_context>
chip_gen: v7x
topology: tpu7x:2x2x1
jax: 0.10.0
libtpu: 0.0.40
codegen_flags: <defaults>
</compile_context>

<pallas_src>
import jax
import jax.numpy as jnp
from jax.experimental import pallas as pl
from jax.experimental.pallas import tpu as pltpu

EPS = 1e-5


def bottleneck1d_kernel(x_ref, w1_ref, g1_ref, be1_ref, w2_ref, g2_ref, be2_ref,
                        o_ref):
    inv_n = 1.0 / x_ref.shape[0]                       # true batch size
    x = x_ref[...].astype(jnp.float32)                 # (N, D), read once

    # ---- stage 1: Linear1 (bias cancelled by BN1) -> BN1 (training) -> ReLU
    h = jnp.dot(x, w1_ref[...], preferred_element_type=jnp.float32)   # (N, H)
    m1 = jnp.sum(h, axis=0, keepdims=True) * inv_n
    hc = h - m1                                        # centered (two-pass var)
    v1 = jnp.sum(hc * hc, axis=0, keepdims=True) * inv_n
    scale1 = g1_ref[...] * jax.lax.rsqrt(v1 + EPS)     # rsqrt -> EUP slot
    hr = jnp.maximum(hc * scale1 + be1_ref[...], 0.0)

    # ---- stage 2: Linear2 (bias cancelled by BN2) -> BN2 (training)
    y = jnp.dot(hr, w2_ref[...], preferred_element_type=jnp.float32)  # (N, D)
    m2 = jnp.sum(y, axis=0, keepdims=True) * inv_n
    yc = y - m2
    v2 = jnp.sum(yc * yc, axis=0, keepdims=True) * inv_n
    scale2 = g2_ref[...] * jax.lax.rsqrt(v2 + EPS)

    # ---- residual add, single store
    o_ref[...] = (x + yc * scale2 + be2_ref[...]).astype(o_ref.dtype)


def prepare_params(w1, b1, g1, be1, w2, b2, g2, be2):
    """One-time parameter prep (hoisted out of the per-call path).

    Linear biases are dropped: a per-feature constant is exactly removed by
    training-mode BatchNorm mean subtraction (NOT valid for eval-mode BN)."""
    del b1, b2
    f32 = jnp.float32
    H = w1.shape[1]
    D = w2.shape[1]
    return (w1.astype(f32),
            jnp.reshape(g1, (1, H)).astype(f32),
            jnp.reshape(be1, (1, H)).astype(f32),
            w2.astype(f32),
            jnp.reshape(g2, (1, D)).astype(f32),
            jnp.reshape(be2, (1, D)).astype(f32))


@jax.jit
def bottleneck1d(x, params):
    """x: (N, D). params from prepare_params (w1: (D, H), w2: (H, D))."""
    w1, g1, be1, w2, g2, be2 = params
    N, D = x.shape
    H = w1.shape[1]

    # Every block equals the full array shape, so no (8,128) padding is needed
    # and the whole problem runs as one grid step entirely out of VMEM.
    return pl.pallas_call(
        bottleneck1d_kernel,
        out_shape=jax.ShapeDtypeStruct((N, D), x.dtype),
        grid_spec=pltpu.PrefetchScalarGridSpec(
            num_scalar_prefetch=0,
            grid=(1,),
            in_specs=[
                pl.BlockSpec((N, D), lambda i: (0, 0)),   # x (also the residual)
                pl.BlockSpec((D, H), lambda i: (0, 0)),   # W1
                pl.BlockSpec((1, H), lambda i: (0, 0)),   # gamma1
                pl.BlockSpec((1, H), lambda i: (0, 0)),   # beta1
                pl.BlockSpec((H, D), lambda i: (0, 0)),   # W2
                pl.BlockSpec((1, D), lambda i: (0, 0)),   # gamma2
                pl.BlockSpec((1, D), lambda i: (0, 0)),   # beta2
            ],
            out_specs=pl.BlockSpec((N, D), lambda i: (0, 0)),
        ),
        compiler_params=pltpu.CompilerParams(
            dimension_semantics=("arbitrary",),
        ),
    )(x, w1, g1, be1, w2, g2, be2)


def reference(x, w1, b1, g1, be1, w2, b2, g2, be2):
    """Plain-JAX reference with the original (two-pass, bias-included) math."""
    xf = x.astype(jnp.float32)
    h = xf @ w1 + b1
    m1 = h.mean(0, keepdims=True)
    v1 = ((h - m1) ** 2).mean(0, keepdims=True)
    h = (h - m1) / jnp.sqrt(v1 + EPS) * g1 + be1
    h = jnp.maximum(h, 0.0)
    y = h @ w2 + b2
    m2 = y.mean(0, keepdims=True)
    v2 = ((y - m2) ** 2).mean(0, keepdims=True)
    y = (y - m2) / jnp.sqrt(v2 + EPS) * g2 + be2
    return (xf + y).astype(x.dtype)


if __name__ == "__main__":
    N, D, EXPAND = 64, 32, 5
    H = EXPAND * D

    key = jax.random.PRNGKey(0)
    kx, k1, kb1, k2, kb2 = jax.random.split(key, 5)

    x = jax.random.normal(kx, (N, D), dtype=jnp.float32)

    # Linear params (stored pre-transposed: (in_features, out_features)),
    # PyTorch-like uniform init with bound 1/sqrt(fan_in).
    bound1 = 1.0 / (D ** 0.5)
    w1 = jax.random.uniform(k1, (D, H), jnp.float32, -bound1, bound1)
    b1 = jax.random.uniform(kb1, (1, H), jnp.float32, -bound1, bound1)
    bound2 = 1.0 / (H ** 0.5)
    w2 = jax.random.uniform(k2, (H, D), jnp.float32, -bound2, bound2)
    b2 = jax.random.uniform(kb2, (1, D), jnp.float32, -bound2, bound2)

    # BatchNorm affine params (PyTorch default init: gamma=1, beta=0).
    g1 = jnp.ones((1, H), jnp.float32)
    be1 = jnp.zeros((1, H), jnp.float32)
    g2 = jnp.ones((1, D), jnp.float32)
    be2 = jnp.zeros((1, D), jnp.float32)

    params = prepare_params(w1, b1, g1, be1, w2, b2, g2, be2)
    out = jax.block_until_ready(bottleneck1d(x, params))
    ref = reference(x, w1, b1, g1, be1, w2, b2, g2, be2)

    assert out.shape == (N, D)
    err = float(jnp.max(jnp.abs(out - ref)))
    assert jnp.allclose(out, ref, atol=1e-4, rtol=1e-4), f"max abs err {err}"

    print("KERNEL_OK")
</pallas_src>

<mosaic_0001>
module attributes {stable_mosaic.version = 11 : i64} {
  func.func @bottleneck1d_kernel(%arg0: i32, %arg1: memref<64x32xf32, #tpu.memory_space<vmem>>, %arg2: memref<32x160xf32, #tpu.memory_space<vmem>>, %arg3: memref<1x160xf32, #tpu.memory_space<vmem>>, %arg4: memref<1x160xf32, #tpu.memory_space<vmem>>, %arg5: memref<160x32xf32, #tpu.memory_space<vmem>>, %arg6: memref<1x32xf32, #tpu.memory_space<vmem>>, %arg7: memref<1x32xf32, #tpu.memory_space<vmem>>, %arg8: memref<64x32xf32, #tpu.memory_space<vmem>>) attributes {dimension_semantics = [#tpu.dimension_semantics<arbitrary>], iteration_bounds = array<i64: 1>, scalar_prefetch = 0 : i64, scratch_operands = 0 : i64, tpu.core_type = #tpu.core_type<tc>, window_params = [{pipeline_mode = #tpu.pipeline_mode<synchronous>, transform_indices = @transform_0, window_bounds = array<i64: 64, 32>}, {pipeline_mode = #tpu.pipeline_mode<synchronous>, transform_indices = @transform_1, window_bounds = array<i64: 32, 160>}, {pipeline_mode = #tpu.pipeline_mode<synchronous>, transform_indices = @transform_2, window_bounds = array<i64: 1, 160>}, {pipeline_mode = #tpu.pipeline_mode<synchronous>, transform_indices = @transform_3, window_bounds = array<i64: 1, 160>}, {pipeline_mode = #tpu.pipeline_mode<synchronous>, transform_indices = @transform_4, window_bounds = array<i64: 160, 32>}, {pipeline_mode = #tpu.pipeline_mode<synchronous>, transform_indices = @transform_5, window_bounds = array<i64: 1, 32>}, {pipeline_mode = #tpu.pipeline_mode<synchronous>, transform_indices = @transform_6, window_bounds = array<i64: 1, 32>}, {pipeline_mode = #tpu.pipeline_mode<synchronous>, transform_indices = @transform_7, window_bounds = array<i64: 64, 32>}]} {
    %c0 = arith.constant 0 : index
    %c0_0 = arith.constant 0 : index
    %0 = vector.load %arg1[%c0, %c0_0] : memref<64x32xf32, #tpu.memory_space<vmem>>, vector<64x32xf32>
    %c0_1 = arith.constant 0 : index
    %c0_2 = arith.constant 0 : index
    %1 = vector.load %arg2[%c0_1, %c0_2] : memref<32x160xf32, #tpu.memory_space<vmem>>, vector<32x160xf32>
    %cst = arith.constant dense<0.000000e+00> : vector<64x160xf32>
    %2 = tpu.matmul %0, %1, %cst {dimension_numbers = #tpu.dot_dimension_numbers<[1], [0], [0], [1], [0, 0, 1, 1], [], []>} : vector<64x32xf32>, vector<32x160xf32>, vector<64x160xf32> -> vector<64x160xf32>
    %cst_3 = arith.constant dense<0.000000e+00> : vector<160xf32>
    %3 = vector.multi_reduction <add>, %2, %cst_3 [0] : vector<64x160xf32> to vector<160xf32>
    %4 = vector.shape_cast %3 : vector<160xf32> to vector<1x160xf32>
    %cst_4 = arith.constant 1.562500e-02 : f32
    %5 = vector.broadcast %cst_4 : f32 to vector<1x160xf32>
    %6 = arith.mulf %4, %5 : vector<1x160xf32>
    %7 = vector.broadcast %6 : vector<1x160xf32> to vector<64x160xf32>
    %8 = arith.subf %2, %7 : vector<64x160xf32>
    %9 = arith.mulf %8, %8 : vector<64x160xf32>
    %cst_5 = arith.constant dense<0.000000e+00> : vector<160xf32>
    %10 = vector.multi_reduction <add>, %9, %cst_5 [0] : vector<64x160xf32> to vector<160xf32>
    %11 = vector.shape_cast %10 : vector<160xf32> to vector<1x160xf32>
    %cst_6 = arith.constant 1.562500e-02 : f32
    %12 = vector.broadcast %cst_6 : f32 to vector<1x160xf32>
    %13 = arith.mulf %11, %12 : vector<1x160xf32>
    %c0_7 = arith.constant 0 : index
    %c0_8 = arith.constant 0 : index
    %14 = vector.load %arg3[%c0_7, %c0_8] : memref<1x160xf32, #tpu.memory_space<vmem>>, vector<1x160xf32>
    %cst_9 = arith.constant 9.99999974E-6 : f32
    %15 = vector.broadcast %cst_9 : f32 to vector<1x160xf32>
    %16 = arith.addf %13, %15 : vector<1x160xf32>
    %17 = math.rsqrt %16 : vector<1x160xf32>
    %18 = arith.mulf %14, %17 : vector<1x160xf32>
    %19 = vector.broadcast %18 : vector<1x160xf32> to vector<64x160xf32>
    %20 = arith.mulf %8, %19 : vector<64x160xf32>
    %c0_10 = arith.constant 0 : index
    %c0_11 = arith.constant 0 : index
    %21 = vector.load %arg4[%c0_10, %c0_11] : memref<1x160xf32, #tpu.memory_space<vmem>>, vector<1x160xf32>
    %22 = vector.broadcast %21 : vector<1x160xf32> to vector<64x160xf32>
    %23 = arith.addf %20, %22 : vector<64x160xf32>
    %cst_12 = arith.constant 0.000000e+00 : f32
    %24 = vector.broadcast %cst_12 : f32 to vector<64x160xf32>
    %25 = arith.maximumf %23, %24 : vector<64x160xf32>
    %c0_13 = arith.constant 0 : index
    %c0_14 = arith.constant 0 : index
    %26 = vector.load %arg5[%c0_13, %c0_14] : memref<160x32xf32, #tpu.memory_space<vmem>>, vector<160x32xf32>
    %cst_15 = arith.constant dense<0.000000e+00> : vector<64x32xf32>
    %27 = tpu.matmul %25, %26, %cst_15 {dimension_numbers = #tpu.dot_dimension_numbers<[1], [0], [0], [1], [0, 0, 1, 1], [], []>} : vector<64x160xf32>, vector<160x32xf32>, vector<64x32xf32> -> vector<64x32xf32>
    %cst_16 = arith.constant dense<0.000000e+00> : vector<32xf32>
    %28 = vector.multi_reduction <add>, %27, %cst_16 [0] : vector<64x32xf32> to vector<32xf32>
    %29 = vector.shape_cast %28 : vector<32xf32> to vector<1x32xf32>
    %cst_17 = arith.constant 1.562500e-02 : f32
    %30 = vector.broadcast %cst_17 : f32 to vector<1x32xf32>
    %31 = arith.mulf %29, %30 : vector<1x32xf32>
    %32 = vector.broadcast %31 : vector<1x32xf32> to vector<64x32xf32>
    %33 = arith.subf %27, %32 : vector<64x32xf32>
    %34 = arith.mulf %33, %33 : vector<64x32xf32>
    %cst_18 = arith.constant dense<0.000000e+00> : vector<32xf32>
    %35 = vector.multi_reduction <add>, %34, %cst_18 [0] : vector<64x32xf32> to vector<32xf32>
    %36 = vector.shape_cast %35 : vector<32xf32> to vector<1x32xf32>
    %cst_19 = arith.constant 1.562500e-02 : f32
    %37 = vector.broadcast %cst_19 : f32 to vector<1x32xf32>
    %38 = arith.mulf %36, %37 : vector<1x32xf32>
    %c0_20 = arith.constant 0 : index
    %c0_21 = arith.constant 0 : index
    %39 = vector.load %arg6[%c0_20, %c0_21] : memref<1x32xf32, #tpu.memory_space<vmem>>, vector<1x32xf32>
    %cst_22 = arith.constant 9.99999974E-6 : f32
    %40 = vector.broadcast %cst_22 : f32 to vector<1x32xf32>
    %41 = arith.addf %38, %40 : vector<1x32xf32>
    %42 = math.rsqrt %41 : vector<1x32xf32>
    %43 = arith.mulf %39, %42 : vector<1x32xf32>
    %44 = vector.broadcast %43 : vector<1x32xf32> to vector<64x32xf32>
    %45 = arith.mulf %33, %44 : vector<64x32xf32>
    %46 = arith.addf %0, %45 : vector<64x32xf32>
    %c0_23 = arith.constant 0 : index
    %c0_24 = arith.constant 0 : index
    %47 = vector.load %arg7[%c0_23, %c0_24] : memref<1x32xf32, #tpu.memory_space<vmem>>, vector<1x32xf32>
    %48 = vector.broadcast %47 : vector<1x32xf32> to vector<64x32xf32>
    %49 = arith.addf %46, %48 : vector<64x32xf32>
    %c0_25 = arith.constant 0 : index
    %c0_26 = arith.constant 0 : index
    %50 = vector.load %arg8[%c0_25, %c0_26] : memref<64x32xf32, #tpu.memory_space<vmem>>, vector<64x32xf32>
    tpu.vector_store %arg8[%c0_25, %c0_26], %49 {strides = array<i32>} : memref<64x32xf32, #tpu.memory_space<vmem>>, vector<64x32xf32>,
    return
  }
  func.func @transform_0(%arg0: i32) -> (i32, i32) {
    %c0_i32 = arith.constant 0 : i32
    %c0_i32_0 = arith.constant 0 : i32
    %c0_i32_1 = arith.constant 0 : i32
    return %c0_i32, %c0_i32_0 : i32, i32
  }
  func.func @transform_1(%arg0: i32) -> (i32, i32) {
    %c0_i32 = arith.constant 0 : i32
    %c0_i32_0 = arith.constant 0 : i32
    %c0_i32_1 = arith.constant 0 : i32
    return %c0_i32, %c0_i32_0 : i32, i32
  }
  func.func @transform_2(%arg0: i32) -> (i32, i32) {
    %c0_i32 = arith.constant 0 : i32
    %c0_i32_0 = arith.constant 0 : i32
    %c0_i32_1 = arith.constant 0 : i32
    return %c0_i32, %c0_i32_0 : i32, i32
  }
  func.func @transform_3(%arg0: i32) -> (i32, i32) {
    %c0_i32 = arith.constant 0 : i32
    %c0_i32_0 = arith.constant 0 : i32
    %c0_i32_1 = arith.constant 0 : i32
    return %c0_i32, %c0_i32_0 : i32, i32
  }
  func.func @transform_4(%arg0: i32) -> (i32, i32) {
    %c0_i32 = arith.constant 0 : i32
    %c0_i32_0 = arith.constant 0 : i32
    %c0_i32_1 = arith.constant 0 : i32
    return %c0_i32, %c0_i32_0 : i32, i32
  }
  func.func @transform_5(%arg0: i32) -> (i32, i32) {
    %c0_i32 = arith.constant 0 : i32
    %c0_i32_0 = arith.constant 0 : i32
    %c0_i32_1 = arith.constant 0 : i32
    return %c0_i32, %c0_i32_0 : i32, i32
  }
  func.func @transform_6(%arg0: i32) -> (i32, i32) {
    %c0_i32 = arith.constant 0 : i32
    %c0_i32_0 = arith.constant 0 : i32
    %c0_i32_1 = arith.constant 0 : i32
    return %c0_i32, %c0_i32_0 : i32, i32
  }
  func.func @transform_7(%arg0: i32) -> (i32, i32) {
    %c0_i32 = arith.constant 0 : i32
    %c0_i32_0 = arith.constant 0 : i32
    %c0_i32_1 = arith.constant 0 : i32
    return %c0_i32, %c0_i32_0 : i32, i32
  }
}

</mosaic_0001>

<llo_original>
// kernel: bottleneck1d.1
$region0: #{bottleneck1d.1}
  #allocation0 [shape = 'u32[]', space=smem, size = 0x4, offset = 0x4, fixed_abs, tag = 'smem constant byte address 0x4 - core index']
  #allocation1 [shape = 'u32[144,128]{1,0:T(1,128)}', space=vmem, size = 0x12000, scoped, tag = 'internal scratch']
  %s0 = inlined_call_operand.vmem [shape: f32[64,32], index: 0, kind: input, shape index: {}]
  %s1 = inlined_call_operand.vmem [shape: f32[32,160], index: 1, kind: input, shape index: {}]
  %s2 = inlined_call_operand.vmem [shape: f32[1,160], index: 2, kind: input, shape index: {}]
  %s3 = inlined_call_operand.vmem [shape: f32[1,160], index: 3, kind: input, shape index: {}]
  %s4 = inlined_call_operand.vmem [shape: f32[160,32], index: 4, kind: input, shape index: {}]
  %s5 = inlined_call_operand.vmem [shape: f32[1,32], index: 5, kind: input, shape index: {}]
  %s6 = inlined_call_operand.vmem [shape: f32[1,32], index: 6, kind: input, shape index: {}]
  %s7 = inlined_call_operand.vmem [shape: f32[64,32], index: 7, kind: output, shape index: {}]
  %s8 = sld [smem:[#allocation0]]
  $region38: #{bottleneck1d.1} parent=0
    _
  %s10 = ssub.s32 1, %s8
  %s11 = scalar_select 0, %s10, %s8
  // Predicated region
  $region2: #{bottleneck1d.1} parent=0 // pred_check
    _
  $region3: #{bottleneck1d.1} parent=0 // pred_check_branch
    %13 = sbr.rel (0) target = $region5
  $region4: #{bottleneck1d.1} parent=0 // pred_region
    _
  $region5: #{bottleneck1d.1} parent=0 // pred_fallthru
    _
  // Predicated region
  $region6: #{bottleneck1d.1} parent=0 // pred_check
    _
  $region7: #{bottleneck1d.1} parent=0 // pred_check_branch
    %15 = sbr.rel (0) target = $region9
  $region8: #{bottleneck1d.1} parent=0 // pred_region
    _
  $region9: #{bottleneck1d.1} parent=0 // pred_fallthru
    _
  // Predicated region
  $region10: #{bottleneck1d.1} parent=0 // pred_check
    _
  $region11: #{bottleneck1d.1} parent=0 // pred_check_branch
    %17 = sbr.rel (0) target = $region13
  $region12: #{bottleneck1d.1} parent=0 // pred_region
    _
  $region13: #{bottleneck1d.1} parent=0 // pred_fallthru
    _
  // Predicated region
  $region14: #{bottleneck1d.1} parent=0 // pred_check
    _
  $region15: #{bottleneck1d.1} parent=0 // pred_check_branch
    %19 = sbr.rel (0) target = $region17
  $region16: #{bottleneck1d.1} parent=0 // pred_region
    _
  $region17: #{bottleneck1d.1} parent=0 // pred_fallthru
    _
  // Predicated region
  $region18: #{bottleneck1d.1} parent=0 // pred_check
    _
  $region19: #{bottleneck1d.1} parent=0 // pred_check_branch
    %21 = sbr.rel (0) target = $region21
  $region20: #{bottleneck1d.1} parent=0 // pred_region
    _
  $region21: #{bottleneck1d.1} parent=0 // pred_fallthru
    _
  // Predicated region
  $region22: #{bottleneck1d.1} parent=0 // pred_check
    _
  $region23: #{bottleneck1d.1} parent=0 // pred_check_branch
    %23 = sbr.rel (0) target = $region25
  $region24: #{bottleneck1d.1} parent=0 // pred_region
    _
  $region25: #{bottleneck1d.1} parent=0 // pred_fallthru
    _
  // Predicated region
  $region26: #{bottleneck1d.1} parent=0 // pred_check
    _
  $region27: #{bottleneck1d.1} parent=0 // pred_check_branch
    %25 = sbr.rel (0) target = $region29
  $region28: #{bottleneck1d.1} parent=0 // pred_region
    _
  $region29: #{bottleneck1d.1} parent=0 // pred_fallthru
    _
  %v26 = vld [vmem:[%s0] sm:$0xff]
  %v27 = vld [vmem:[%s0 + $0x8] sm:$0xff]
  %v28 = vld [vmem:[%s0 + $0x10] sm:$0xff]
  %v29 = vld [vmem:[%s0 + $0x18] sm:$0xff]
  %v30 = vld [vmem:[%s0 + $0x20] sm:$0xff]
  %v31 = vld [vmem:[%s0 + $0x28] sm:$0xff]
  %v32 = vld [vmem:[%s0 + $0x30] sm:$0xff]
  %v33 = vld [vmem:[%s0 + $0x38] sm:$0xff]
  %v34 = vld [vmem:[%s1] sm:$0xff]
  %v35 = vld [vmem:[%s1 + $0x8] sm:$0xff]
  %v36 = vld [vmem:[%s1 + $0x10] sm:$0xff]
  %v37 = vld [vmem:[%s1 + $0x18] sm:$0xff]
  %v38 = vld [vmem:[%s1 + $0x20] sm:$0xff]
  %v39 = vld [vmem:[%s1 + $0x28] sm:$0xff]
  %v40 = vld [vmem:[%s1 + $0x30] sm:$0xff]
  %v41 = vld [vmem:[%s1 + $0x38] sm:$0xff]
  %vm42 = vcmask 261120
  %v44 = vsel %vm42, %v26, 0
  %v47 = vsel %vm42, %v27, 0
  %v50 = vsel %vm42, %v28, 0
  %v53 = vsel %vm42, %v29, 0
  %v56 = vsel %vm42, %v30, 0
  %v59 = vsel %vm42, %v31, 0
  %v62 = vsel %vm42, %v32, 0
  %v65 = vsel %vm42, %v33, 0
  %67 = vmatprep.subr.mxu0 %v35
  %68 = vmatpush1.msra.mxu0 %v34
  %69 = vmatprep.subr.mxu0 %v37
  %70 = vmatpush1.msra.mxu0 %v36
  %71 = vmatprep.subr.mxu0 %v39
  %72 = vmatpush1.msra.mxu0 %v38
  %73 = vmatprep.subr.mxu0 %v41
  %74 = vmatpush1.msra.mxu0 %v40
  %75 = vmatprep.subr.mxu0 0.0
  %76 = vmatpush1.msra.mxu0 0.0
  %77 = vmatprep.subr.mxu0 0.0
  %78 = vmatpush1.msra.mxu0 0.0
  %79 = vmatprep.subr.mxu0 0.0
  %80 = vmatpush1.msra.mxu0 0.0
  %81 = vmatprep.subr.mxu0 0.0
  %82 = vmatpush1.msra.mxu0 0.0
  %83 = vmatprep.subr.mxu0 0.0
  %84 = vmatpush1.msra.mxu0 0.0
  %85 = vmatprep.subr.mxu0 0.0
  %86 = vmatpush1.msra.mxu0 0.0
  %87 = vmatprep.subr.mxu0 0.0
  %88 = vmatpush1.msra.mxu0 0.0
  %89 = vmatprep.subr.mxu0 0.0
  %90 = vmatpush1.msra.mxu0 0.0
  %91 = vmatprep.subr.mxu0 0.0
  %92 = vmatpush1.msra.mxu0 0.0
  %93 = vmatprep.subr.mxu0 0.0
  %94 = vmatpush1.msra.mxu0 0.0
  %95 = vmatprep.subr.mxu0 0.0
  %96 = vmatpush1.msra.mxu0 0.0
  %97 = vmatprep.subr.mxu0 0.0
  %98 = vmatpush1.msra.mxu0 0.0
  %99 = vmatprep.subr.mxu0 0.0
  %100 = vmatpush1.msra.mxu0 0.0
  %101 = vmatprep.subr.mxu0 0.0
  %102 = vmatpush1.msra.mxu0 0.0
  %103 = vmatprep.subr.mxu0 0.0
  %104 = vmatpush1.msra.mxu0 0.0
  %105 = vmatprep.subr.mxu0 0.0
  %106 = vmatpush1.msra.mxu0 0.0
  %107 = vmatprep.subr.mxu0 0.0
  %108 = vmatpush1.msra.mxu0 0.0
  %109 = vmatprep.subr.mxu0 0.0
  %110 = vmatpush1.msra.mxu0 0.0
  %111 = vmatprep.subr.mxu0 0.0
  %112 = vmatpush1.msra.mxu0 0.0
  %113 = vmatprep.subr.mxu0 0.0
  %114 = vmatpush1.msra.mxu0 0.0
  %115 = vmatprep.subr.mxu0 0.0
  %116 = vmatpush1.msra.mxu0 0.0
  %117 = vmatprep.subr.mxu0 0.0
  %118 = vmatpush1.msra.mxu0 0.0
  %119 = vmatprep.subr.mxu0 0.0
  %120 = vmatpush1.msra.mxu0 0.0
  %121 = vmatprep.subr.mxu0 0.0
  %122 = vmatpush1.msra.mxu0 0.0
  %123 = vmatprep.subr.mxu0 0.0
  %124 = vmatpush1.msra.mxu0 0.0
  %125 = vmatprep.subr.mxu0 0.0
  %126 = vmatpush1.msra.mxu0 0.0
  %127 = vmatprep.subr.mxu0 0.0
  %128 = vmatpush1.msra.mxu0 0.0
  %129 = vmatprep.subr.mxu0 0.0
  %130 = vmatpush1.msra.mxu0 0.0
  %131 = vmatprep.mubr.f32.mxu0 0.0
  %132 = vmatmul.mubr.f32.gmra.mrb[0].mxu0 %v44
  %v133 = vpop.f32.mrb[0].mxu0
  %v134 = vadd.f32 0.0, %v133
  %v135 = vpop.f32.mrb[0].mxu0
  %v136 = vadd.f32 0.0, %v135
  %137 = vmatprep.mubr.f32.mxu0 0.0
  %138 = vmatmul.mubr.f32.gmra.mrb[0].mxu0 %v47
  %v139 = vpop.f32.mrb[0].mxu0
  %v140 = vadd.f32 0.0, %v139
  %v141 = vpop.f32.mrb[0].mxu0
  %v142 = vadd.f32 0.0, %v141
  %143 = vmatprep.mubr.f32.mxu0 0.0
  %144 = vmatmul.mubr.f32.gmra.mrb[0].mxu0 %v50
  %v145 = vpop.f32.mrb[0].mxu0
  %v146 = vadd.f32 0.0, %v145
  %v147 = vpop.f32.mrb[0].mxu0
  %v148 = vadd.f32 0.0, %v147
  %149 = vmatprep.mubr.f32.mxu0 0.0
  %150 = vmatmul.mubr.f32.gmra.mrb[0].mxu0 %v53
  %v151 = vpop.f32.mrb[0].mxu0
  %v152 = vadd.f32 0.0, %v151
  %v153 = vpop.f32.mrb[0].mxu0
  %v154 = vadd.f32 0.0, %v153
  %155 = vmatprep.mubr.f32.mxu0 0.0
  %156 = vmatmul.mubr.f32.gmra.mrb[0].mxu0 %v56
  %v157 = vpop.f32.mrb[0].mxu0
  %v158 = vadd.f32 0.0, %v157
  %v159 = vpop.f32.mrb[0].mxu0
  %v160 = vadd.f32 0.0, %v159
  %161 = vmatprep.mubr.f32.mxu0 0.0
  %162 = vmatmul.mubr.f32.gmra.mrb[0].mxu0 %v59
  %v163 = vpop.f32.mrb[0].mxu0
  %v164 = vadd.f32 0.0, %v163
  %v165 = vpop.f32.mrb[0].mxu0
  %v166 = vadd.f32 0.0, %v165
  %167 = vmatprep.mubr.f32.mxu0 0.0
  %168 = vmatmul.mubr.f32.gmra.mrb[0].mxu0 %v62
  %v169 = vpop.f32.mrb[0].mxu0
  %v170 = vadd.f32 0.0, %v169
  %v171 = vpop.f32.mrb[0].mxu0
  %v172 = vadd.f32 0.0, %v171
  %173 = vmatprep.mubr.f32.mxu0 0.0
  %174 = vmatmul.mubr.f32.gmra.mrb[0].mxu0 %v65
  %v175 = vpop.f32.mrb[0].mxu0
  %v176 = vadd.f32 0.0, %v175
  %v177 = vpop.f32.mrb[0].mxu0
  %v178 = vadd.f32 0.0, %v177
  %179 = vdwg.mxu0
  %v180 = vadd.f32 %v134, %v140
  %v181 = vadd.f32 %v180, %v146
  %v182 = vadd.f32 %v181, %v152
  %v183 = vadd.f32 %v182, %v158
  %v184 = vadd.f32 %v183, %v164
  %v185 = vadd.f32 %v184, %v170
  %v186 = vadd.f32 %v185, %v176
  %v187 = vrot.slane %v186, 4
  %v188 = vadd.f32 %v186, %v187
  %v189 = vrot.slane %v188, 2
  %v190 = vadd.f32 %v188, %v189
  %v191 = vrot.slane %v190, 1
  %v192 = vadd.f32 %v190, %v191
  %v193 = vsel %vm42, %v136, 0.0
  %v194 = vsel %vm42, %v142, 0.0
  %v195 = vadd.f32 %v193, %v194
  %v196 = vsel %vm42, %v148, 0.0
  %v197 = vadd.f32 %v195, %v196
  %v198 = vsel %vm42, %v154, 0.0
  %v199 = vadd.f32 %v197, %v198
  %v200 = vsel %vm42, %v160, 0.0
  %v201 = vadd.f32 %v199, %v200
  %v202 = vsel %vm42, %v166, 0.0
  %v203 = vadd.f32 %v201, %v202
  %v204 = vsel %vm42, %v172, 0.0
  %v205 = vadd.f32 %v203, %v204
  %v206 = vsel %vm42, %v178, 0.0
  %v207 = vadd.f32 %v205, %v206
  %v208 = vrot.slane %v207, 4
  %v209 = vadd.f32 %v207, %v208
  %v210 = vrot.slane %v209, 2
  %v211 = vadd.f32 %v209, %v210
  %v212 = vrot.slane %v211, 1
  %v213 = vadd.f32 %v211, %v212
  %v214 = vmul.f32 %v192, 0.015625
  %v215 = vmul.f32 %v213, 0.015625
  %v216 = vsub.f32 %v134, %v214
  %v217 = vsub.f32 %v136, %v215
  %v218 = vsub.f32 %v140, %v214
  %v219 = vsub.f32 %v142, %v215
  %v220 = vsub.f32 %v146, %v214
  %v221 = vsub.f32 %v148, %v215
  %v222 = vsub.f32 %v152, %v214
  %v223 = vsub.f32 %v154, %v215
  %v224 = vsub.f32 %v158, %v214
  %v225 = vsub.f32 %v160, %v215
  %v226 = vsub.f32 %v164, %v214
  %v227 = vsub.f32 %v166, %v215
  %v228 = vsub.f32 %v170, %v214
  %v229 = vsub.f32 %v172, %v215
  %v230 = vsub.f32 %v176, %v214
  %v231 = vsub.f32 %v178, %v215
  %v232 = vmul.f32 %v216, %v216
  %v233 = vmul.f32 %v217, %v217
  %v234 = vmul.f32 %v218, %v218
  %v235 = vmul.f32 %v219, %v219
  %v236 = vmul.f32 %v220, %v220
  %v237 = vmul.f32 %v221, %v221
  %v238 = vmul.f32 %v222, %v222
  %v239 = vmul.f32 %v223, %v223
  %v240 = vmul.f32 %v224, %v224
  %v241 = vmul.f32 %v225, %v225
  %v242 = vmul.f32 %v226, %v226
  %v243 = vmul.f32 %v227, %v227
  %v244 = vmul.f32 %v228, %v228
  %v245 = vmul.f32 %v229, %v229
  %v246 = vmul.f32 %v230, %v230
  %v247 = vmul.f32 %v231, %v231
  %v248 = vadd.f32 %v232, %v234
  %v249 = vadd.f32 %v248, %v236
  %v250 = vadd.f32 %v249, %v238
  %v251 = vadd.f32 %v250, %v240
  %v252 = vadd.f32 %v251, %v242
  %v253 = vadd.f32 %v252, %v244
  %v254 = vadd.f32 %v253, %v246
  %v255 = vrot.slane %v254, 4
  %v256 = vadd.f32 %v254, %v255
  %v257 = vrot.slane %v256, 2
  %v258 = vadd.f32 %v256, %v257
  %v259 = vrot.slane %v258, 1
  %v260 = vadd.f32 %v258, %v259
  %v261 = vsel %vm42, %v233, 0.0
  %v262 = vsel %vm42, %v235, 0.0
  %v263 = vadd.f32 %v261, %v262
  %v264 = vsel %vm42, %v237, 0.0
  %v265 = vadd.f32 %v263, %v264
  %v266 = vsel %vm42, %v239, 0.0
  %v267 = vadd.f32 %v265, %v266
  %v268 = vsel %vm42, %v241, 0.0
  %v269 = vadd.f32 %v267, %v268
  %v270 = vsel %vm42, %v243, 0.0
  %v271 = vadd.f32 %v269, %v270
  %v272 = vsel %vm42, %v245, 0.0
  %v273 = vadd.f32 %v271, %v272
  %v274 = vsel %vm42, %v247, 0.0
  %v275 = vadd.f32 %v273, %v274
  %v276 = vrot.slane %v275, 4
  %v277 = vadd.f32 %v275, %v276
  %v278 = vrot.slane %v277, 2
  %v279 = vadd.f32 %v277, %v278
  %v280 = vrot.slane %v279, 1
  %v281 = vadd.f32 %v279, %v280
  %v282 = vmul.f32 %v260, 0.015625
  %v283 = vmul.f32 %v281, 0.015625
  %v284 = vld [vmem:[%s2] sm:$0x3]
  %v285 = vadd.f32 %v282, 1e-05
  %v286 = vadd.f32 %v283, 1e-05
  %v287 = vrsqrt.pop %v285
  %v288 = vrsqrt.pop %v286
  %v291 = vcombine.low %v287, %v288
  %v293 = vunpack.c.l.s4 1966171168
  %v294 = vunpack.c.0.s8 %v293
  %v295 = vlaneseq
  %v296 = vshrl.u32 %v295, 7
  %v297 = vsub.s32 %v294, %v296
  %v298 = vrot.slane %v291, %v297
  %v300 = vunpack.c.l.s4 1966171168
  %v301 = vunpack.c.0.s8 %v300
  %v302 = vlaneseq
  %v303 = vshrl.u32 %v302, 7
  %v304 = vsub.s32 %v301, %v303
  %v305 = vrot.slane %v298, %v304
  %v307 = vmul.f32 %v284, %v305
  %v309 = vlaneseq
  %v310 = vshrl.u32 %v309, 7
  %v311 = vsub.s32 0, %v310
  %v312 = vrot.slane %v307, %v311
  %v313 = vlaneseq
  %v314 = vshrl.u32 %v313, 7
  %v315 = vsub.s32 1, %v314
  %v316 = vrot.slane %v307, %v315
  %v319 = vmul.f32 %v216, %v312
  %v320 = vmul.f32 %v217, %v316
  %v321 = vmul.f32 %v218, %v312
  %v322 = vmul.f32 %v219, %v316
  %v323 = vmul.f32 %v220, %v312
  %v324 = vmul.f32 %v221, %v316
  %v325 = vmul.f32 %v222, %v312
  %v326 = vmul.f32 %v223, %v316
  %v327 = vmul.f32 %v224, %v312
  %v328 = vmul.f32 %v225, %v316
  %v329 = vmul.f32 %v226, %v312
  %v330 = vmul.f32 %v227, %v316
  %v331 = vmul.f32 %v228, %v312
  %v332 = vmul.f32 %v229, %v316
  %v333 = vmul.f32 %v230, %v312
  %v334 = vmul.f32 %v231, %v316
  %v335 = vld [vmem:[%s3] sm:$0x3]
  %v337 = vlaneseq
  %v338 = vshrl.u32 %v337, 7
  %v339 = vsub.s32 0, %v338
  %v340 = vrot.slane %v335, %v339
  %v341 = vlaneseq
  %v342 = vshrl.u32 %v341, 7
  %v343 = vsub.s32 1, %v342
  %v344 = vrot.slane %v335, %v343
  %v347 = vadd.f32 %v319, %v340
  %v348 = vadd.f32 %v320, %v344
  %v349 = vadd.f32 %v321, %v340
  %v350 = vadd.f32 %v322, %v344
  %v351 = vadd.f32 %v323, %v340
  %v352 = vadd.f32 %v324, %v344
  %v353 = vadd.f32 %v325, %v340
  %v354 = vadd.f32 %v326, %v344
  %v355 = vadd.f32 %v327, %v340
  %v356 = vadd.f32 %v328, %v344
  %v357 = vadd.f32 %v329, %v340
  %v358 = vadd.f32 %v330, %v344
  %v359 = vadd.f32 %v331, %v340
  %v360 = vadd.f32 %v332, %v344
  %v361 = vadd.f32 %v333, %v340
  %v362 = vadd.f32 %v334, %v344
  %v363 = vmax.f32 %v347, 0.0
  %v364 = vmax.f32 %v348, 0.0
  %v365 = vmax.f32 %v349, 0.0
  %v366 = vmax.f32 %v350, 0.0
  %v367 = vmax.f32 %v351, 0.0
  %v368 = vmax.f32 %v352, 0.0
  %v369 = vmax.f32 %v353, 0.0
  %v370 = vmax.f32 %v354, 0.0
  %v371 = vmax.f32 %v355, 0.0
  %v372 = vmax.f32 %v356, 0.0
  %v373 = vmax.f32 %v357, 0.0
  %v374 = vmax.f32 %v358, 0.0
  %v375 = vmax.f32 %v359, 0.0
  %v376 = vmax.f32 %v360, 0.0
  %v377 = vmax.f32 %v361, 0.0
  %v378 = vmax.f32 %v362, 0.0
  %v379 = vld [vmem:[%s4] sm:$0xff]
  %v380 = vld [vmem:[%s4 + $0x8] sm:$0xff]
  %v381 = vld [vmem:[%s4 + $0x10] sm:$0xff]
  %v382 = vld [vmem:[%s4 + $0x18] sm:$0xff]
  %v383 = vld [vmem:[%s4 + $0x20] sm:$0xff]
  %v384 = vld [vmem:[%s4 + $0x28] sm:$0xff]
  %v385 = vld [vmem:[%s4 + $0x30] sm:$0xff]
  %v386 = vld [vmem:[%s4 + $0x38] sm:$0xff]
  %v387 = vld [vmem:[%s4 + $0x40] sm:$0xff]
  %v388 = vld [vmem:[%s4 + $0x48] sm:$0xff]
  %v389 = vld [vmem:[%s4 + $0x50] sm:$0xff]
  %v390 = vld [vmem:[%s4 + $0x58] sm:$0xff]
  %v391 = vld [vmem:[%s4 + $0x60] sm:$0xff]
  %v392 = vld [vmem:[%s4 + $0x68] sm:$0xff]
  %v393 = vld [vmem:[%s4 + $0x70] sm:$0xff]
  %v394 = vld [vmem:[%s4 + $0x78] sm:$0xff]
  %v395 = vld [vmem:[%s4 + $0x80] sm:$0xff]
  %v396 = vld [vmem:[%s4 + $0x88] sm:$0xff]
  %v397 = vld [vmem:[%s4 + $0x90] sm:$0xff]
  %v398 = vld [vmem:[%s4 + $0x98] sm:$0xff]
  %v400 = vsel %vm42, %v364, 0
  %v403 = vsel %vm42, %v366, 0
  %v406 = vsel %vm42, %v368, 0
  %v409 = vsel %vm42, %v370, 0
  %v412 = vsel %vm42, %v372, 0
  %v415 = vsel %vm42, %v374, 0
  %v418 = vsel %vm42, %v376, 0
  %v421 = vsel %vm42, %v378, 0
  %423 = vmatprep.subr.mxu0 0.0
  %424 = vmatpush1.msra.mxu0 %v379
  %425 = vmatprep.subr.mxu0 0.0
  %426 = vmatpush1.msra.mxu0 %v380
  %427 = vmatprep.subr.mxu0 0.0
  %428 = vmatpush1.msra.mxu0 %v381
  %429 = vmatprep.subr.mxu0 0.0
  %430 = vmatpush1.msra.mxu0 %v382
  %431 = vmatprep.subr.mxu0 0.0
  %432 = vmatpush1.msra.mxu0 %v383
  %433 = vmatprep.subr.mxu0 0.0
  %434 = vmatpush1.msra.mxu0 %v384
  %435 = vmatprep.subr.mxu0 0.0
  %436 = vmatpush1.msra.mxu0 %v385
  %437 = vmatprep.subr.mxu0 0.0
  %438 = vmatpush1.msra.mxu0 %v386
  %439 = vmatprep.subr.mxu0 0.0
  %440 = vmatpush1.msra.mxu0 %v387
  %441 = vmatprep.subr.mxu0 0.0
  %442 = vmatpush1.msra.mxu0 %v388
  %443 = vmatprep.subr.mxu0 0.0
  %444 = vmatpush1.msra.mxu0 %v389
  %445 = vmatprep.subr.mxu0 0.0
  %446 = vmatpush1.msra.mxu0 %v390
  %447 = vmatprep.subr.mxu0 0.0
  %448 = vmatpush1.msra.mxu0 %v391
  %449 = vmatprep.subr.mxu0 0.0
  %450 = vmatpush1.msra.mxu0 %v392
  %451 = vmatprep.subr.mxu0 0.0
  %452 = vmatpush1.msra.mxu0 %v393
  %453 = vmatprep.subr.mxu0 0.0
  %454 = vmatpush1.msra.mxu0 %v394
  %455 = vmatprep.subr.mxu0 0.0
  %456 = vmatpush1.msra.mxu0 %v395
  %457 = vmatprep.subr.mxu0 0.0
  %458 = vmatpush1.msra.mxu0 %v396
  %459 = vmatprep.subr.mxu0 0.0
  %460 = vmatpush1.msra.mxu0 %v397
  %461 = vmatprep.subr.mxu0 0.0
  %462 = vmatpush1.msra.mxu0 %v398
  %463 = vmatprep.subr.mxu0 0.0
  %464 = vmatpush1.msra.mxu0 0.0
  %465 = vmatprep.subr.mxu0 0.0
  %466 = vmatpush1.msra.mxu0 0.0
  %467 = vmatprep.subr.mxu0 0.0
  %468 = vmatpush1.msra.mxu0 0.0
  %469 = vmatprep.subr.mxu0 0.0
  %470 = vmatpush1.msra.mxu0 0.0
  %471 = vmatprep.subr.mxu0 0.0
  %472 = vmatpush1.msra.mxu0 0.0
  %473 = vmatprep.subr.mxu0 0.0
  %474 = vmatpush1.msra.mxu0 0.0
  %475 = vmatprep.subr.mxu0 0.0
  %476 = vmatpush1.msra.mxu0 0.0
  %477 = vmatprep.subr.mxu0 0.0
  %478 = vmatpush1.msra.mxu0 0.0
  %479 = vmatprep.subr.mxu0 0.0
  %480 = vmatpush1.msra.mxu0 0.0
  %481 = vmatprep.subr.mxu0 0.0
  %482 = vmatpush1.msra.mxu0 0.0
  %483 = vmatprep.subr.mxu0 0.0
  %484 = vmatpush1.msra.mxu0 0.0
  %485 = vmatprep.subr.mxu0 0.0
  %486 = vmatpush1.msra.mxu0 0.0
  %487 = vmatprep.mubr.f32.mxu0 %v400
  %488 = vmatmul.mubr.f32.gmra.mrb[0].mxu0 %v363
  %v489 = vpop.f32.mrb[0].mxu0
  %v490 = vadd.f32 0.0, %v489
  %v491 = vpop.f32.mrb[0].mxu0
  %492 = vmatprep.mubr.f32.mxu0 %v403
  %493 = vmatmul.mubr.f32.gmra.mrb[0].mxu0 %v365
  %v494 = vpop.f32.mrb[0].mxu0
  %v495 = vadd.f32 0.0, %v494
  %v496 = vpop.f32.mrb[0].mxu0
  %497 = vmatprep.mubr.f32.mxu0 %v406
  %498 = vmatmul.mubr.f32.gmra.mrb[0].mxu0 %v367
  %v499 = vpop.f32.mrb[0].mxu0
  %v500 = vadd.f32 0.0, %v499
  %v501 = vpop.f32.mrb[0].mxu0
  %502 = vmatprep.mubr.f32.mxu0 %v409
  %503 = vmatmul.mubr.f32.gmra.mrb[0].mxu0 %v369
  %v504 = vpop.f32.mrb[0].mxu0
  %v505 = vadd.f32 0.0, %v504
  %v506 = vpop.f32.mrb[0].mxu0
  %507 = vmatprep.mubr.f32.mxu0 %v412
  %508 = vmatmul.mubr.f32.gmra.mrb[0].mxu0 %v371
  %v509 = vpop.f32.mrb[0].mxu0
  %v510 = vadd.f32 0.0, %v509
  %v511 = vpop.f32.mrb[0].mxu0
  %512 = vmatprep.mubr.f32.mxu0 %v415
  %513 = vmatmul.mubr.f32.gmra.mrb[0].mxu0 %v373
  %v514 = vpop.f32.mrb[0].mxu0
  %v515 = vadd.f32 0.0, %v514
  %v516 = vpop.f32.mrb[0].mxu0
  %517 = vmatprep.mubr.f32.mxu0 %v418
  %518 = vmatmul.mubr.f32.gmra.mrb[0].mxu0 %v375
  %v519 = vpop.f32.mrb[0].mxu0
  %v520 = vadd.f32 0.0, %v519
  %v521 = vpop.f32.mrb[0].mxu0
  %522 = vmatprep.mubr.f32.mxu0 %v421
  %523 = vmatmul.mubr.f32.gmra.mrb[0].mxu0 %v377
  %v524 = vpop.f32.mrb[0].mxu0
  %v525 = vadd.f32 0.0, %v524
  %v526 = vpop.f32.mrb[0].mxu0
  %527 = vdwg.mxu0
  %v528 = vsel %vm42, %v490, 0.0
  %v529 = vsel %vm42, %v495, 0.0
  %v530 = vadd.f32 %v528, %v529
  %v531 = vsel %vm42, %v500, 0.0
  %v532 = vadd.f32 %v530, %v531
  %v533 = vsel %vm42, %v505, 0.0
  %v534 = vadd.f32 %v532, %v533
  %v535 = vsel %vm42, %v510, 0.0
  %v536 = vadd.f32 %v534, %v535
  %v537 = vsel %vm42, %v515, 0.0
  %v538 = vadd.f32 %v536, %v537
  %v539 = vsel %vm42, %v520, 0.0
  %v540 = vadd.f32 %v538, %v539
  %v541 = vsel %vm42, %v525, 0.0
  %v542 = vadd.f32 %v540, %v541
  %v543 = vrot.slane %v542, 4
  %v544 = vadd.f32 %v542, %v543
  %v545 = vrot.slane %v544, 2
  %v546 = vadd.f32 %v544, %v545
  %v547 = vrot.slane %v546, 1
  %v548 = vadd.f32 %v546, %v547
  %v549 = vmul.f32 %v548, 0.015625
  %v550 = vsub.f32 %v490, %v549
  %v551 = vsub.f32 %v495, %v549
  %v552 = vsub.f32 %v500, %v549
  %v553 = vsub.f32 %v505, %v549
  %v554 = vsub.f32 %v510, %v549
  %v555 = vsub.f32 %v515, %v549
  %v556 = vsub.f32 %v520, %v549
  %v557 = vsub.f32 %v525, %v549
  %v558 = vmul.f32 %v550, %v550
  %v559 = vmul.f32 %v551, %v551
  %v560 = vmul.f32 %v552, %v552
  %v561 = vmul.f32 %v553, %v553
  %v562 = vmul.f32 %v554, %v554
  %v563 = vmul.f32 %v555, %v555
  %v564 = vmul.f32 %v556, %v556
  %v565 = vmul.f32 %v557, %v557
  %v566 = vsel %vm42, %v558, 0.0
  %v567 = vsel %vm42, %v559, 0.0
  %v568 = vadd.f32 %v566, %v567
  %v569 = vsel %vm42, %v560, 0.0
  %v570 = vadd.f32 %v568, %v569
  %v571 = vsel %vm42, %v561, 0.0
  %v572 = vadd.f32 %v570, %v571
  %v573 = vsel %vm42, %v562, 0.0
  %v574 = vadd.f32 %v572, %v573
  %v575 = vsel %vm42, %v563, 0.0
  %v576 = vadd.f32 %v574, %v575
  %v577 = vsel %vm42, %v564, 0.0
  %v578 = vadd.f32 %v576, %v577
  %v579 = vsel %vm42, %v565, 0.0
  %v580 = vadd.f32 %v578, %v579
  %v581 = vrot.slane %v580, 4
  %v582 = vadd.f32 %v580, %v581
  %v583 = vrot.slane %v582, 2
  %v584 = vadd.f32 %v582, %v583
  %v585 = vrot.slane %v584, 1
  %v586 = vadd.f32 %v584, %v585
  %v587 = vmul.f32 %v586, 0.015625
  %v588 = vld [vmem:[%s5] sm:$0x1]
  %v589 = vadd.f32 %v587, 1e-05
  %v590 = vrsqrt.pop %v589
  %v591 = vmul.f32 %v588, %v590
  %v593 = vlaneseq
  %v594 = vshrl.u32 %v593, 7
  %v595 = vsub.s32 0, %v594
  %v596 = vrot.slane %v591, %v595
  %v598 = vmul.f32 %v550, %v596
  %v599 = vmul.f32 %v551, %v596
  %v600 = vmul.f32 %v552, %v596
  %v601 = vmul.f32 %v553, %v596
  %v602 = vmul.f32 %v554, %v596
  %v603 = vmul.f32 %v555, %v596
  %v604 = vmul.f32 %v556, %v596
  %v605 = vmul.f32 %v557, %v596
  %v606 = vadd.f32 %v26, %v598
  %v607 = vadd.f32 %v27, %v599
  %v608 = vadd.f32 %v28, %v600
  %v609 = vadd.f32 %v29, %v601
  %v610 = vadd.f32 %v30, %v602
  %v611 = vadd.f32 %v31, %v603
  %v612 = vadd.f32 %v32, %v604
  %v613 = vadd.f32 %v33, %v605
  %v614 = vld [vmem:[%s6] sm:$0x1]
  %v616 = vlaneseq
  %v617 = vshrl.u32 %v616, 7
  %v618 = vsub.s32 0, %v617
  %v619 = vrot.slane %v614, %v618
  %v621 = vadd.f32 %v606, %v619
  %v622 = vadd.f32 %v607, %v619
  %v623 = vadd.f32 %v608, %v619
  %v624 = vadd.f32 %v609, %v619
  %v625 = vadd.f32 %v610, %v619
  %v626 = vadd.f32 %v611, %v619
  %v627 = vadd.f32 %v612, %v619
  %v628 = vadd.f32 %v613, %v619
  %629 = vst.msk [vmem:[%s7] sm:$0xff] %vm42, %v621
  %630 = vst.msk [vmem:[%s7 + $0x8] sm:$0xff] %vm42, %v622
  %631 = vst.msk [vmem:[%s7 + $0x10] sm:$0xff] %vm42, %v623
  %632 = vst.msk [vmem:[%s7 + $0x18] sm:$0xff] %vm42, %v624
  %633 = vst.msk [vmem:[%s7 + $0x20] sm:$0xff] %vm42, %v625
  %634 = vst.msk [vmem:[%s7 + $0x28] sm:$0xff] %vm42, %v626
  %635 = vst.msk [vmem:[%s7 + $0x30] sm:$0xff] %vm42, %v627
  %636 = vst.msk [vmem:[%s7 + $0x38] sm:$0xff] %vm42, %v628
  // Predicated region
  $region30: #{bottleneck1d.1} parent=0 // pred_check
    _
  $region31: #{bottleneck1d.1} parent=0 // pred_check_branch
    %638 = sbr.rel (0) target = $region33
  $region32: #{bottleneck1d.1} parent=0 // pred_region
    _
  $region33: #{bottleneck1d.1} parent=0 // pred_fallthru
    _
  // Predicated region
  $region34: #{bottleneck1d.1} parent=0 // pred_check
    _
  $region35: #{bottleneck1d.1} parent=0 // pred_check_branch
    %640 = sbr.rel (0) target = $region37
  $region36: #{bottleneck1d.1} parent=0 // pred_region
    _
  $region37: #{bottleneck1d.1} parent=0 // pred_fallthru
    _

</llo_original>
